<compile_context>
chip_gen: v6e
topology: v6e:2x2x1
jax: 0.10.0
libtpu: 0.0.40
codegen_flags: <defaults>
</compile_context>

<pallas_src>
import jax
import jax.numpy as jnp
from jax import lax
from jax.experimental import pallas as pl
from jax.experimental.pallas import tpu as pltpu


def _round_up(v, m):
    return ((v + m - 1) // m) * m


def _pick_l_tile(l_pad, block_l, halo):
    """Largest multiple-of-128 divisor of l_pad that is <= block_l and >= halo."""
    if l_pad <= block_l:
        return l_pad
    t = (min(block_l, l_pad) // 128) * 128
    while t >= 128:
        if l_pad % t == 0 and t >= halo:
            return t
        t -= 128
    return l_pad  # fall back to a single full-length tile


def _pick_batch_block(b, requested):
    """Divisor of b; auto choice keeps >= 2 parallel batch grid points (v7x megacore)."""
    if requested is None:
        requested = max(1, min(4, b // 2))
    requested = max(1, min(int(requested), b))
    while b % requested:
        requested -= 1
    return requested


def _make_kernel(K, dil, TL, P, Bt, c_in, c_out, compute_dtype, neg_slope=0.01):
    """Fused: causal conv1 -> (folded)BN1 -> LeakyReLU -> causal conv2 -> BN2 -> LeakyReLU -> add."""
    shifts = [(K - 1 - j) * dil for j in range(K)]  # static causal tap shifts, all <= pad <= P
    W = P + TL                                       # per-batch window width

    def fused_causal_conv(halo_ref, cur_list, w):
        """One causal dilated conv over the current tile, all K taps fused into one MXU call.

        halo_ref : (Bt, C, P) compute_dtype scratch; previous tile's tail (zeros at li == 0).
        cur_list : Bt tensors of (C, TL) in compute_dtype.
        w        : (c_out, K*C) compute_dtype, taps flattened tap-major.
        Returns (c_out, Bt*TL) f32.
        """
        parts = []
        for bb in range(Bt):
            parts.append(halo_ref[bb])     # (C, P)
            parts.append(cur_list[bb])     # (C, TL)
        window = jnp.concatenate(parts, axis=-1)        # (C, Bt*(P+TL)), built in-register

        rows = []
        for s in shifts:
            if Bt == 1:
                rows.append(window[:, P - s:W - s])     # (C, TL) shifted (dilated) tap window
            else:
                rows.append(jnp.concatenate(
                    [window[:, bb * W + P - s: bb * W + W - s] for bb in range(Bt)],
                    axis=-1))                           # (C, Bt*TL)
        stacked = jnp.concatenate(rows, axis=0)          # (K*C, Bt*TL)

        acc = jnp.dot(w, stacked, preferred_element_type=jnp.float32)   # (c_out, Bt*TL) f32

        # Halo writeback: only the last P (>= pad) columns of each batch's current tile.
        for bb in range(Bt):
            halo_ref[bb] = cur_list[bb][:, TL - P:]
        return acc

    def kernel(x_ref, w1_ref, w2_ref, b1_ref, b2_ref, out_ref, xhalo_ref, yhalo_ref):
        # x_ref:     (Bt, c_in, TL)   current L tile (channels on sublanes, L on lanes)
        # w1_ref:    (c_out, K*c_in)  conv1 weights, BN1 scale folded, taps flattened
        # w2_ref:    (c_out, K*c_out) conv2 weights, BN2 scale folded
        # b*_ref:    (c_out, 1)       folded BatchNorm biases (f32)
        # out_ref:   (Bt, c_out, TL)
        # xhalo_ref: (Bt, c_in, P)    causal halo for x (compute dtype)
        # yhalo_ref: (Bt, c_out, P)   causal halo for y (compute dtype)
        li = pl.program_id(1)

        @pl.when(li == 0)
        def _init():
            # Causal left padding: the (virtual) tile preceding the first one is all zeros.
            xhalo_ref[...] = jnp.zeros_like(xhalo_ref)
            yhalo_ref[...] = jnp.zeros_like(yhalo_ref)

        x_cur = [x_ref[bb] for bb in range(Bt)]          # Bt x (c_in, TL), compute dtype

        # ---- branch 1: causal conv1 (+ folded BN1 bias) + LeakyReLU ----
        y = fused_causal_conv(xhalo_ref, x_cur, w1_ref[...]) + b1_ref[...]
        y = jnp.maximum(y, neg_slope * y)                # f32 epilogue (mul + max)

        # ---- branch 2 (residual path): causal conv2 (+ folded BN2 bias) + LeakyReLU ----
        y_cd = y.astype(compute_dtype)
        y_cur = [y_cd[:, bb * TL:(bb + 1) * TL] for bb in range(Bt)]
        h = fused_causal_conv(yhalo_ref, y_cur, w2_ref[...]) + b2_ref[...]
        h = jnp.maximum(h, neg_slope * h)

        out = y + h                                      # module returns y + h (f32)
        for bb in range(Bt):
            out_ref[bb] = out[:, bb * TL:(bb + 1) * TL].astype(out_ref.dtype)

    return kernel


def conv1d_stack_forward(x_ncl, w1_oik, bn1, w2_ook, bn2, *,
                         kernel_size=3, dilation=1, block_l=2048, batch_block=None,
                         compute_dtype=jnp.bfloat16, out_dtype=jnp.float32, eps=1e-5):
    """Conv1dStack forward (eval mode).

    x_ncl:  (B, C_in, L) float32, PyTorch NCL layout.
    w*_oik: PyTorch Conv1d weights, (C_out, C_in, K) / (C_out, C_out, K).
    bn*:    (gamma, beta, running_mean, running_var), each (C_out,).
    Returns (B, C_out, L) in out_dtype (default f32; pass bfloat16 on v7x if downstream allows).
    """
    B, c_in, L = x_ncl.shape
    c_out = w1_oik.shape[0]
    K = kernel_size
    pad = (K - 1) * dilation
    if pad <= 0:
        raise ValueError("kernel_size=1 (pad=0) makes the module's `[:, :, :-pad]` trim "
                         "degenerate; not supported.")
    if pad > L:
        raise ValueError(f"causal halo ({pad}) larger than sequence length ({L}).")

    # Lane-dense output: pad L up to a multiple of 128 (trim after the call).
    l_pad = _round_up(L, 128)
    P = _round_up(pad, 128)            # halo scratch width; only the last `pad` columns are read
    tl = _pick_l_tile(l_pad, block_l, P)
    assert l_pad % tl == 0 and tl % 128 == 0 and tl >= P
    n_l = l_pad // tl

    bt = _pick_batch_block(B, batch_block)
    n_b = B // bt

    def fold(w, bn):
        # Fold eval-mode BatchNorm scale into the conv weights; flatten taps tap-major so a
        # single (c_out, K*C) @ (K*C, Bt*TL) contraction covers all K dilated taps.
        g, be, mu, var = bn
        s = (g / jnp.sqrt(var + eps)).astype(jnp.float32)
        b = (be - mu * s).astype(jnp.float32).reshape(c_out, 1)
        wf = w.astype(jnp.float32) * s[:, None, None]                  # (O, I, K)
        wf = jnp.transpose(wf, (0, 2, 1)).reshape(c_out, -1)           # (O, K*I), tap-major
        return wf.astype(compute_dtype), b

    w1f, b1 = fold(w1_oik, bn1)
    w2f, b2 = fold(w2_ook, bn2)

    x = x_ncl.astype(compute_dtype)          # bf16 halves the HBM read of x on v6e/v7x
    if l_pad != L:
        x = jnp.pad(x, ((0, 0), (0, 0), (0, l_pad - L)))

    kern = _make_kernel(K, dilation, tl, P, bt, c_in, c_out, compute_dtype)

    return_full = pl.pallas_call(
        kern,
        out_shape=jax.ShapeDtypeStruct((B, c_out, l_pad), out_dtype),
        grid_spec=pltpu.PrefetchScalarGridSpec(
            num_scalar_prefetch=0,
            # NOTE: the halo carry requires the L axis to be the innermost, sequentially
            # executed ("arbitrary") grid axis; do not reorder it or mark it "parallel".
            grid=(n_b, n_l),
            in_specs=[
                pl.BlockSpec((bt, c_in, tl), lambda b, l: (b, 0, l)),
                pl.BlockSpec((c_out, K * c_in), lambda b, l: (0, 0)),
                pl.BlockSpec((c_out, K * c_out), lambda b, l: (0, 0)),
                pl.BlockSpec((c_out, 1), lambda b, l: (0, 0)),
                pl.BlockSpec((c_out, 1), lambda b, l: (0, 0)),
            ],
            out_specs=pl.BlockSpec((bt, c_out, tl), lambda b, l: (b, 0, l)),
            scratch_shapes=[
                pltpu.VMEM((bt, c_in, P), compute_dtype),    # x causal halo (prev tile tail)
                pltpu.VMEM((bt, c_out, P), compute_dtype),   # y causal halo
            ],
        ),
        compiler_params=pltpu.CompilerParams(
            dimension_semantics=("parallel", "arbitrary"),
            # Blocks here are tiny (<< 1 MiB each, double-buffered); the 48 MiB cap keeps
            # headroom even under v7x's 64 MiB physical VMEM while allowing large TL.
            vmem_limit_bytes=48 * 1024 * 1024,
        ),
    )(x, w1f, w2f, b1, b2)

    return return_full[:, :, :L] if l_pad != L else return_full


def ref_forward(x_ncl, w1_oik, bn1, w2_ook, bn2, *, dilation=1, eps=1e-5, neg=0.01):
    """Plain-JAX reference matching the PyTorch module (eval mode)."""
    K = w1_oik.shape[-1]
    pad = (K - 1) * dilation

    def branch(z, w, bn):
        g, be, mu, var = bn
        s = g / jnp.sqrt(var + eps)
        b = be - mu * s
        y = lax.conv_general_dilated(
            z, w, window_strides=(1,), padding=[(pad, pad)],
            rhs_dilation=(dilation,), dimension_numbers=("NCH", "OIH", "NCH"))
        y = y[:, :, :-pad]
        y = y * s[None, :, None] + b[None, :, None]
        return jnp.where(y >= 0, y, neg * y)

    y = branch(x_ncl, w1_oik, bn1)
    h = branch(y, w2_ook, bn2)
    return y + h


if __name__ == "__main__":
    key = jax.random.PRNGKey(0)
    B, C_IN, C_OUT, L, K = 2, 8, 16, 256, 3
    ks = jax.random.split(key, 11)

    # Input / parameters in PyTorch layouts.
    x = jax.random.normal(ks[0], (B, C_IN, L), jnp.float32)                 # NCL
    w1 = 0.1 * jax.random.normal(ks[1], (C_OUT, C_IN, K), jnp.float32)      # (out, in, k)
    w2 = 0.1 * jax.random.normal(ks[2], (C_OUT, C_OUT, K), jnp.float32)

    bn1 = (1.0 + 0.1 * jax.random.normal(ks[3], (C_OUT,), jnp.float32),     # gamma
           0.1 * jax.random.normal(ks[4], (C_OUT,), jnp.float32),           # beta
           0.1 * jax.random.normal(ks[5], (C_OUT,), jnp.float32),           # running_mean
           jnp.abs(jax.random.normal(ks[6], (C_OUT,), jnp.float32)) + 0.5)  # running_var
    bn2 = (1.0 + 0.1 * jax.random.normal(ks[7], (C_OUT,), jnp.float32),
           0.1 * jax.random.normal(ks[8], (C_OUT,), jnp.float32),
           0.1 * jax.random.normal(ks[9], (C_OUT,), jnp.float32),
           jnp.abs(jax.random.normal(ks[10], (C_OUT,), jnp.float32)) + 0.5)

    # f32 path, multi-tile (block_l=128 -> 2 L tiles), exercises the causal halo carry.
    for dil in (1, 2):
        out = conv1d_stack_forward(x, w1, bn1, w2, bn2, kernel_size=K, dilation=dil,
                                   block_l=128, batch_block=1,
                                   compute_dtype=jnp.float32)
        out = jax.block_until_ready(out)
        ref = ref_forward(x, w1, bn1, w2, bn2, dilation=dil)
        max_err = float(jnp.max(jnp.abs(out - ref)))
        assert jnp.allclose(out, ref, atol=1e-4, rtol=1e-4), ("f32", dil, max_err)

    # f32 path with batch blocking (Bt=2): one (c_out, K*C) @ (K*C, Bt*TL) MXU call per step.
    out_bb = conv1d_stack_forward(x, w1, bn1, w2, bn2, kernel_size=K, dilation=2,
                                  block_l=128, batch_block=2,
                                  compute_dtype=jnp.float32)
    out_bb = jax.block_until_ready(out_bb)
    ref2 = ref_forward(x, w1, bn1, w2, bn2, dilation=2)
    err_bb = float(jnp.max(jnp.abs(out_bb - ref2)))
    assert jnp.allclose(out_bb, ref2, atol=1e-4, rtol=1e-4), ("batch_block", err_bb)

    # Length not a multiple of 128: wrapper pads L -> 256 (lane-dense stores) and trims.
    L_ODD = 200
    x_odd = x[:, :, :L_ODD]
    out_odd = conv1d_stack_forward(x_odd, w1, bn1, w2, bn2, kernel_size=K, dilation=2,
                                   block_l=128, batch_block=1,
                                   compute_dtype=jnp.float32)
    out_odd = jax.block_until_ready(out_odd)
    ref_odd = ref_forward(x_odd, w1, bn1, w2, bn2, dilation=2)
    err_odd = float(jnp.max(jnp.abs(out_odd - ref_odd)))
    assert out_odd.shape == (B, C_OUT, L_ODD)
    assert jnp.allclose(out_odd, ref_odd, atol=1e-4, rtol=1e-4), ("odd_L", err_odd)

    # Default path: bf16 MXU operands / halo buffers, f32 accumulation & epilogue (loose check).
    out_bf16 = conv1d_stack_forward(x, w1, bn1, w2, bn2, kernel_size=K, dilation=1)
    out_bf16 = jax.block_until_ready(out_bf16)
    ref1 = ref_forward(x, w1, bn1, w2, bn2, dilation=1)
    err_bf16 = float(jnp.max(jnp.abs(out_bf16 - ref1)))
    assert err_bf16 < 1e-1, err_bf16

    print("KERNEL_OK")
</pallas_src>

<mosaic_0001>
module attributes {stable_mosaic.version = 11 : i64} {
  func.func @kernel(%arg0: i32, %arg1: i32, %arg2: memref<1x8x128xf32, #tpu.memory_space<vmem>>, %arg3: memref<16x24xf32, #tpu.memory_space<vmem>>, %arg4: memref<16x48xf32, #tpu.memory_space<vmem>>, %arg5: memref<16x1xf32, #tpu.memory_space<vmem>>, %arg6: memref<16x1xf32, #tpu.memory_space<vmem>>, %arg7: memref<1x16x128xf32, #tpu.memory_space<vmem>>, %arg8: memref<1x8x128xf32, #tpu.memory_space<vmem>>, %arg9: memref<1x16x128xf32, #tpu.memory_space<vmem>>) attributes {dimension_semantics = [#tpu.dimension_semantics<parallel>, #tpu.dimension_semantics<arbitrary>], iteration_bounds = array<i64: 2, 2>, scalar_prefetch = 0 : i64, scratch_operands = 2 : i64, tpu.core_type = #tpu.core_type<tc>, window_params = [{transform_indices = @transform_0, window_bounds = array<i64: 1, 8, 128>}, {pipeline_mode = #tpu.pipeline_mode<synchronous>, transform_indices = @transform_1, window_bounds = array<i64: 16, 24>}, {pipeline_mode = #tpu.pipeline_mode<synchronous>, transform_indices = @transform_2, window_bounds = array<i64: 16, 48>}, {pipeline_mode = #tpu.pipeline_mode<synchronous>, transform_indices = @transform_3, window_bounds = array<i64: 16, 1>}, {pipeline_mode = #tpu.pipeline_mode<synchronous>, transform_indices = @transform_4, window_bounds = array<i64: 16, 1>}, {transform_indices = @transform_5, window_bounds = array<i64: 1, 16, 128>}]} {
    %c0_i32 = arith.constant 0 : i32
    %0 = arith.cmpi eq, %arg1, %c0_i32 : i32
    %1 = arith.extui %0 : i1 to i32
    %c0_i32_0 = arith.constant 0 : i32
    %2 = arith.cmpi ne, %1, %c0_i32_0 : i32
    scf.if %2 {
      %cst_29 = arith.constant 0.000000e+00 : f32
      %45 = vector.broadcast %cst_29 : f32 to vector<1x8x128xf32>
      %c0_30 = arith.constant 0 : index
      %c0_31 = arith.constant 0 : index
      %c0_32 = arith.constant 0 : index
      %46 = vector.load %arg8[%c0_30, %c0_31, %c0_32] : memref<1x8x128xf32, #tpu.memory_space<vmem>>, vector<1x8x128xf32>
      tpu.vector_store %arg8[%c0_30, %c0_31, %c0_32], %45 {strides = array<i32>} : memref<1x8x128xf32, #tpu.memory_space<vmem>>, vector<1x8x128xf32>,
      %cst_33 = arith.constant 0.000000e+00 : f32
      %47 = vector.broadcast %cst_33 : f32 to vector<1x16x128xf32>
      %c0_34 = arith.constant 0 : index
      %c0_35 = arith.constant 0 : index
      %c0_36 = arith.constant 0 : index
      %48 = vector.load %arg9[%c0_34, %c0_35, %c0_36] : memref<1x16x128xf32, #tpu.memory_space<vmem>>, vector<1x16x128xf32>
      tpu.vector_store %arg9[%c0_34, %c0_35, %c0_36], %47 {strides = array<i32>} : memref<1x16x128xf32, #tpu.memory_space<vmem>>, vector<1x16x128xf32>,
    } else {
    }
    %c0 = arith.constant 0 : index
    %c0_1 = arith.constant 0 : index
    %c0_2 = arith.constant 0 : index
    %3 = vector.load %arg2[%c0, %c0_1, %c0_2] : memref<1x8x128xf32, #tpu.memory_space<vmem>>, vector<1x8x128xf32>
    %4 = vector.shape_cast %3 : vector<1x8x128xf32> to vector<8x128xf32>
    %c0_3 = arith.constant 0 : index
    %c0_4 = arith.constant 0 : index
    %5 = vector.load %arg3[%c0_3, %c0_4] : memref<16x24xf32, #tpu.memory_space<vmem>>, vector<16x24xf32>
    %c0_5 = arith.constant 0 : index
    %c0_6 = arith.constant 0 : index
    %c0_7 = arith.constant 0 : index
    %6 = vector.load %arg8[%c0_5, %c0_6, %c0_7] : memref<1x8x128xf32, #tpu.memory_space<vmem>>, vector<1x8x128xf32>
    %7 = vector.shape_cast %6 : vector<1x8x128xf32> to vector<8x128xf32>
    %8 = tpu.concatenate %7, %4 in 1 : vector<8x128xf32>, vector<8x128xf32> -> vector<8x256xf32>
    %9 = vector.extract_strided_slice %8 {offsets = [0, 126], sizes = [8, 128], strides = [1, 1]} : vector<8x256xf32> to vector<8x128xf32>
    %10 = vector.extract_strided_slice %8 {offsets = [0, 127], sizes = [8, 128], strides = [1, 1]} : vector<8x256xf32> to vector<8x128xf32>
    %11 = vector.extract_strided_slice %8 {offsets = [0, 128], sizes = [8, 128], strides = [1, 1]} : vector<8x256xf32> to vector<8x128xf32>
    %12 = tpu.concatenate %9, %10, %11 in 0 : vector<8x128xf32>, vector<8x128xf32>, vector<8x128xf32> -> vector<24x128xf32>
    %cst = arith.constant dense<0.000000e+00> : vector<16x128xf32>
    %13 = tpu.matmul %5, %12, %cst {dimension_numbers = #tpu.dot_dimension_numbers<[1], [0], [0], [1], [0, 0, 1, 1], [], []>} : vector<16x24xf32>, vector<24x128xf32>, vector<16x128xf32> -> vector<16x128xf32>
    %c0_8 = arith.constant 0 : index
    %c0_9 = arith.constant 0 : index
    %c0_10 = arith.constant 0 : index
    %14 = vector.load %arg8[%c0_8, %c0_9, %c0_10] : memref<1x8x128xf32, #tpu.memory_space<vmem>>, vector<1x8x128xf32>
    %15 = vector.shape_cast %14 : vector<1x8x128xf32> to vector<8x128xf32>
    %16 = vector.shape_cast %4 : vector<8x128xf32> to vector<1x8x128xf32>
    tpu.vector_store %arg8[%c0_8, %c0_9, %c0_10], %16 {strides = array<i32>} : memref<1x8x128xf32, #tpu.memory_space<vmem>>, vector<1x8x128xf32>,
    %c0_11 = arith.constant 0 : index
    %c0_12 = arith.constant 0 : index
    %17 = vector.load %arg5[%c0_11, %c0_12] : memref<16x1xf32, #tpu.memory_space<vmem>>, vector<16x1xf32>
    %18 = vector.broadcast %17 : vector<16x1xf32> to vector<16x128xf32>
    %19 = arith.addf %13, %18 : vector<16x128xf32>
    %cst_13 = arith.constant 0.00999999977 : f32
    %20 = vector.broadcast %cst_13 : f32 to vector<16x128xf32>
    %21 = arith.mulf %20, %19 : vector<16x128xf32>
    %22 = arith.maximumf %19, %21 : vector<16x128xf32>
    %c0_14 = arith.constant 0 : index
    %c0_15 = arith.constant 0 : index
    %23 = vector.load %arg4[%c0_14, %c0_15] : memref<16x48xf32, #tpu.memory_space<vmem>>, vector<16x48xf32>
    %c0_16 = arith.constant 0 : index
    %c0_17 = arith.constant 0 : index
    %c0_18 = arith.constant 0 : index
    %24 = vector.load %arg9[%c0_16, %c0_17, %c0_18] : memref<1x16x128xf32, #tpu.memory_space<vmem>>, vector<1x16x128xf32>
    %25 = vector.shape_cast %24 : vector<1x16x128xf32> to vector<16x128xf32>
    %26 = tpu.concatenate %25, %22 in 1 : vector<16x128xf32>, vector<16x128xf32> -> vector<16x256xf32>
    %27 = vector.extract_strided_slice %26 {offsets = [0, 126], sizes = [16, 128], strides = [1, 1]} : vector<16x256xf32> to vector<16x128xf32>
    %28 = vector.extract_strided_slice %26 {offsets = [0, 127], sizes = [16, 128], strides = [1, 1]} : vector<16x256xf32> to vector<16x128xf32>
    %29 = vector.extract_strided_slice %26 {offsets = [0, 128], sizes = [16, 128], strides = [1, 1]} : vector<16x256xf32> to vector<16x128xf32>
    %30 = tpu.concatenate %27, %28, %29 in 0 : vector<16x128xf32>, vector<16x128xf32>, vector<16x128xf32> -> vector<48x128xf32>
    %cst_19 = arith.constant dense<0.000000e+00> : vector<16x128xf32>
    %31 = tpu.matmul %23, %30, %cst_19 {dimension_numbers = #tpu.dot_dimension_numbers<[1], [0], [0], [1], [0, 0, 1, 1], [], []>} : vector<16x48xf32>, vector<48x128xf32>, vector<16x128xf32> -> vector<16x128xf32>
    %c0_20 = arith.constant 0 : index
    %c0_21 = arith.constant 0 : index
    %c0_22 = arith.constant 0 : index
    %32 = vector.load %arg9[%c0_20, %c0_21, %c0_22] : memref<1x16x128xf32, #tpu.memory_space<vmem>>, vector<1x16x128xf32>
    %33 = vector.shape_cast %32 : vector<1x16x128xf32> to vector<16x128xf32>
    %34 = vector.shape_cast %22 : vector<16x128xf32> to vector<1x16x128xf32>
    tpu.vector_store %arg9[%c0_20, %c0_21, %c0_22], %34 {strides = array<i32>} : memref<1x16x128xf32, #tpu.memory_space<vmem>>, vector<1x16x128xf32>,
    %c0_23 = arith.constant 0 : index
    %c0_24 = arith.constant 0 : index
    %35 = vector.load %arg6[%c0_23, %c0_24] : memref<16x1xf32, #tpu.memory_space<vmem>>, vector<16x1xf32>
    %36 = vector.broadcast %35 : vector<16x1xf32> to vector<16x128xf32>
    %37 = arith.addf %31, %36 : vector<16x128xf32>
    %cst_25 = arith.constant 0.00999999977 : f32
    %38 = vector.broadcast %cst_25 : f32 to vector<16x128xf32>
    %39 = arith.mulf %38, %37 : vector<16x128xf32>
    %40 = arith.maximumf %37, %39 : vector<16x128xf32>
    %41 = arith.addf %22, %40 : vector<16x128xf32>
    %c0_26 = arith.constant 0 : index
    %c0_27 = arith.constant 0 : index
    %c0_28 = arith.constant 0 : index
    %42 = vector.load %arg7[%c0_26, %c0_27, %c0_28] : memref<1x16x128xf32, #tpu.memory_space<vmem>>, vector<1x16x128xf32>
    %43 = vector.shape_cast %42 : vector<1x16x128xf32> to vector<16x128xf32>
    %44 = vector.shape_cast %41 : vector<16x128xf32> to vector<1x16x128xf32>
    tpu.vector_store %arg7[%c0_26, %c0_27, %c0_28], %44 {strides = array<i32>} : memref<1x16x128xf32, #tpu.memory_space<vmem>>, vector<1x16x128xf32>,
    return
  }
  func.func @transform_0(%arg0: i32, %arg1: i32) -> (i32, i32, i32) {
    %c0_i32 = arith.constant 0 : i32
    %c0_i32_0 = arith.constant 0 : i32
    return %arg0, %c0_i32, %arg1 : i32, i32, i32
  }
  func.func @transform_1(%arg0: i32, %arg1: i32) -> (i32, i32) {
    %c0_i32 = arith.constant 0 : i32
    %c0_i32_0 = arith.constant 0 : i32
    %c0_i32_1 = arith.constant 0 : i32
    return %c0_i32, %c0_i32_0 : i32, i32
  }
  func.func @transform_2(%arg0: i32, %arg1: i32) -> (i32, i32) {
    %c0_i32 = arith.constant 0 : i32
    %c0_i32_0 = arith.constant 0 : i32
    %c0_i32_1 = arith.constant 0 : i32
    return %c0_i32, %c0_i32_0 : i32, i32
  }
  func.func @transform_3(%arg0: i32, %arg1: i32) -> (i32, i32) {
    %c0_i32 = arith.constant 0 : i32
    %c0_i32_0 = arith.constant 0 : i32
    %c0_i32_1 = arith.constant 0 : i32
    return %c0_i32, %c0_i32_0 : i32, i32
  }
  func.func @transform_4(%arg0: i32, %arg1: i32) -> (i32, i32) {
    %c0_i32 = arith.constant 0 : i32
    %c0_i32_0 = arith.constant 0 : i32
    %c0_i32_1 = arith.constant 0 : i32
    return %c0_i32, %c0_i32_0 : i32, i32
  }
  func.func @transform_5(%arg0: i32, %arg1: i32) -> (i32, i32, i32) {
    %c0_i32 = arith.constant 0 : i32
    %c0_i32_0 = arith.constant 0 : i32
    return %arg0, %c0_i32, %arg1 : i32, i32, i32
  }
}

</mosaic_0001>

<llo_original>
// kernel: tpu_custom_call.1
$region0: #{tpu_custom_call.1}
  #allocation0 [shape = 'u32[]', space=smem, size = 0x4, offset = 0x4, fixed_abs, tag = 'smem constant byte address 0x4 - core index']
  #allocation1 [shape = 'u32[144,128]{1,0:T(1,128)}', space=vmem, size = 0x12000, scoped, tag = 'internal scratch']
  #allocation2 [shape = 'f32[1,8,128]{2,1,0:T(8,128)}', space=vmem, size = 0x1000, scoped, tag = 'scratch operand']
  #allocation3 [shape = 'f32[1,16,128]{2,1,0:T(8,128)}', space=vmem, size = 0x2000, scoped, tag = 'scratch operand']
  %s0 = inlined_call_operand.vmem [shape: f32[2,8,256], index: 0, kind: input, shape index: {}]
  %s1 = inlined_call_operand.hbm [shape: f32[16,24], index: 1, kind: input, shape index: {}]
  %s2 = inlined_call_operand.hbm [shape: f32[16,48], index: 2, kind: input, shape index: {}]
  %s3 = inlined_call_operand.vmem [shape: f32[16,1], index: 3, kind: input, shape index: {}]
  %s4 = inlined_call_operand.vmem [shape: f32[16,1], index: 4, kind: input, shape index: {}]
  %s5 = inlined_call_operand.hbm [shape: f32[2,16,256], index: 5, kind: output, shape index: {}]
  %s6 = sld [smem:[#allocation0]]
  $region65: #{tpu_custom_call.1} parent=0
    _
  %s8 = ssub.s32 1, %s6
  %s9 = scalar_select 0, %s8, %s6
  $region1: #{tpu_custom_call.1} parent=0
    #allocation4 [shape = 'u8[8192]{0}', space=vmem, size = 0x2000, scoped, tag = 'input window, operand 1, single buffered']
    #allocation5 [shape = 's32[2]{0}', space=sflag, size = 0x8, scoped, tag = 'scoped memory for tpu_custom_call.1']
    #allocation6 [shape = 's32[2]{0}', space=sflag, size = 0x8, scoped, tag = 'scoped memory for tpu_custom_call.1']
    #allocation7 [shape = 'u8[8192]{0}', space=vmem, size = 0x2000, scoped, tag = 'input window, operand 2, single buffered']
    #allocation8 [shape = 's32[1]{0}', space=sflag, size = 0x4, scoped, tag = 'scoped memory for tpu_custom_call.1']
    #allocation9 [shape = 'u8[16384]{0}', space=vmem, size = 0x4000, scoped, tag = 'output window, operand 0']
    %10 = vsyncpa [#allocation5], 0
    %11 = vsyncpa [#allocation8], 0
    %12 = vsyncpa [#allocation6], 0
    %s13 = scalar_lea.sflag [#allocation6], 1
    %14 = vsyncpa %s13, 0
    loop: start=0, step=1, limit=6
    $region2: #{tpu_custom_call.1} parent=1 // loop_pre_header
      _
    $region3: #{tpu_custom_call.1} parent=1 // loop_header
      %s16 = sphi 0, %s20
      %p17 = scmp.ge.s32.totalorder %s16, 6
      %s23 = sphi 0, %s35
      %s24 = sphi 0, %s31
      %s25 = sphi 0, %s23
      %s26 = sphi 0, %s24
      %s27 = sphi 0, %s25
      %s28 = sphi 0, %s26
      %s40 = sphi 0, %s42
      %s43 = sphi 0, %s40
      %s44 = sphi 0, %s43
      %s60 = sphi 0, %s44
      %s64 = sphi 0, %s64
      %s66 = sphi 0, %s64
      %s67 = sphi 0, %s66
      %s81 = sphi 0, %s67
      %s85 = sphi 0, %s85
      %s87 = sphi 0, %s85
      %s88 = sphi 0, %s87
      %s102 = sphi 0, %s88
      %s106 = sphi 0, %s106
      %s108 = sphi 0, %s106
      %s109 = sphi 0, %s108
      %s123 = sphi 0, %s109
      %s127 = sphi 0, %s127
      %s129 = sphi 0, %s127
      %s130 = sphi 0, %s129
      %s144 = sphi 0, %s130
      %s152 = sphi 0, %s154
      %s155 = sphi 0, %s152
      %s156 = sphi 0, %s155
      %s172 = sphi 0, %s156
    $region4: #{tpu_custom_call.1} parent=1 // loop_header_branch
      %19 = sbr.rel (%p17) target = $region8
    $region5: #{tpu_custom_call.1} parent=1 // loop_body
      %s21 = ssub.s32 %s16, 1
      %s22 = ssub.s32 %s16, 2
      %s29 = sadd.s32 1, %s24
      %p30 = scmp.ge.s32.totalorder %s29, 2
      %s31 = scalar_select %p30, 0, %s29
      %s32 = sadd.s32 1, %s23
      %s33 = scalar_select %p30, %s32, %s23
      %p34 = scmp.ge.s32.totalorder %s33, 2
      %s35 = scalar_select %p34, 0, %s33
      %s36 = ssub.s32 %s23, %s35
      %s37 = ssub.s32 %s24, %s31
      %s38 = sor.u32 %s36, %s37
      %p39 = scmp.eq.s32.totalorder %s38, 0
      %s41 = sadd.s32 %s40, 1
      %s42 = scalar_select %p39, %s40, %s41
      %p45 = pneg %p39
      %p46 = scmp.eq.s32.totalorder %s16, 3
      %p47 = por %p45, %p46
      %p48 = scmp.ne.s32.totalorder %s40, %s43
      %p49 = scmp.eq.s32.totalorder %s16, 0
      %p50 = por %p48, %p49
      %p51 = scmp.ne.s32.totalorder %s40, %s43
      %p52 = scmp.eq.s32.totalorder %s21, 3
      %p53 = por %p51, %p52
      %p54 = scmp.ne.s32.totalorder %s43, %s44
      %p55 = scmp.eq.s32.totalorder %s21, 0
      %p56 = por %p54, %p55
      %p57 = scmp.ne.s32.totalorder %s43, %s44
      %p58 = scmp.eq.s32.totalorder %s22, 3
      %p59 = por %p57, %p58
      %p61 = scmp.ne.s32.totalorder %s44, %s60
      %p62 = scmp.eq.s32.totalorder %s22, 0
      %p63 = por %p61, %p62
      %s65 = sadd.s32 %s64, 1
      %p68 = scmp.eq.s32.totalorder %s16, 3
      %p69 = scmp.ne.s32.totalorder %s64, %s66
      %p70 = scmp.eq.s32.totalorder %s16, 0
      %p71 = por %p69, %p70
      %p72 = scmp.ne.s32.totalorder %s64, %s66
      %p73 = scmp.eq.s32.totalorder %s21, 3
      %p74 = por %p72, %p73
      %p75 = scmp.ne.s32.totalorder %s66, %s67
      %p76 = scmp.eq.s32.totalorder %s21, 0
      %p77 = por %p75, %p76
      %p78 = scmp.ne.s32.totalorder %s66, %s67
      %p79 = scmp.eq.s32.totalorder %s22, 3
      %p80 = por %p78, %p79
      %p82 = scmp.ne.s32.totalorder %s67, %s81
      %p83 = scmp.eq.s32.totalorder %s22, 0
      %p84 = por %p82, %p83
      %s86 = sadd.s32 %s85, 1
      %p89 = scmp.eq.s32.totalorder %s16, 3
      %p90 = scmp.ne.s32.totalorder %s85, %s87
      %p91 = scmp.eq.s32.totalorder %s16, 0
      %p92 = por %p90, %p91
      %p93 = scmp.ne.s32.totalorder %s85, %s87
      %p94 = scmp.eq.s32.totalorder %s21, 3
      %p95 = por %p93, %p94
      %p96 = scmp.ne.s32.totalorder %s87, %s88
      %p97 = scmp.eq.s32.totalorder %s21, 0
      %p98 = por %p96, %p97
      %p99 = scmp.ne.s32.totalorder %s87, %s88
      %p100 = scmp.eq.s32.totalorder %s22, 3
      %p101 = por %p99, %p100
      %p103 = scmp.ne.s32.totalorder %s88, %s102
      %p104 = scmp.eq.s32.totalorder %s22, 0
      %p105 = por %p103, %p104
      %s107 = sadd.s32 %s106, 1
      %p110 = scmp.eq.s32.totalorder %s16, 3
      %p111 = scmp.ne.s32.totalorder %s106, %s108
      %p112 = scmp.eq.s32.totalorder %s16, 0
      %p113 = por %p111, %p112
      %p114 = scmp.ne.s32.totalorder %s106, %s108
      %p115 = scmp.eq.s32.totalorder %s21, 3
      %p116 = por %p114, %p115
      %p117 = scmp.ne.s32.totalorder %s108, %s109
      %p118 = scmp.eq.s32.totalorder %s21, 0
      %p119 = por %p117, %p118
      %p120 = scmp.ne.s32.totalorder %s108, %s109
      %p121 = scmp.eq.s32.totalorder %s22, 3
      %p122 = por %p120, %p121
      %p124 = scmp.ne.s32.totalorder %s109, %s123
      %p125 = scmp.eq.s32.totalorder %s22, 0
      %p126 = por %p124, %p125
      %s128 = sadd.s32 %s127, 1
      %p131 = scmp.eq.s32.totalorder %s16, 3
      %p132 = scmp.ne.s32.totalorder %s127, %s129
      %p133 = scmp.eq.s32.totalorder %s16, 0
      %p134 = por %p132, %p133
      %p135 = scmp.ne.s32.totalorder %s127, %s129
      %p136 = scmp.eq.s32.totalorder %s21, 3
      %p137 = por %p135, %p136
      %p138 = scmp.ne.s32.totalorder %s129, %s130
      %p139 = scmp.eq.s32.totalorder %s21, 0
      %p140 = por %p138, %p139
      %p141 = scmp.ne.s32.totalorder %s129, %s130
      %p142 = scmp.eq.s32.totalorder %s22, 3
      %p143 = por %p141, %p142
      %p145 = scmp.ne.s32.totalorder %s130, %s144
      %p146 = scmp.eq.s32.totalorder %s22, 0
      %p147 = por %p145, %p146
      %s148 = ssub.s32 %s23, %s35
      %s149 = ssub.s32 %s24, %s31
      %s150 = sor.u32 %s148, %s149
      %p151 = scmp.eq.s32.totalorder %s150, 0
      %s153 = sadd.s32 %s152, 1
      %s154 = scalar_select %p151, %s152, %s153
      %p157 = pneg %p151
      %p158 = scmp.eq.s32.totalorder %s16, 3
      %p159 = por %p157, %p158
      %p160 = scmp.ne.s32.totalorder %s152, %s155
      %p161 = scmp.eq.s32.totalorder %s16, 0
      %p162 = por %p160, %p161
      %p163 = scmp.ne.s32.totalorder %s152, %s155
      %p164 = scmp.eq.s32.totalorder %s21, 3
      %p165 = por %p163, %p164
      %p166 = scmp.ne.s32.totalorder %s155, %s156
      %p167 = scmp.eq.s32.totalorder %s21, 0
      %p168 = por %p166, %p167
      %p169 = scmp.ne.s32.totalorder %s155, %s156
      %p170 = scmp.eq.s32.totalorder %s22, 3
      %p171 = por %p169, %p170
      %p173 = scmp.ne.s32.totalorder %s156, %s172
      %p174 = scmp.eq.s32.totalorder %s22, 0
      %p175 = por %p173, %p174
      %p176 = scmp.le.s32.totalorder 1, %s16
      %p177 = scmp.lt.s32.totalorder %s16, 5
      %p178 = pnand %p176, %p177
      %p179 = pneg %p178
      // Predicated region
      $region9: #{tpu_custom_call.1} parent=5 // pred_check
        _
      $region10: #{tpu_custom_call.1} parent=5 // pred_check_branch
        %181 = sbr.rel (%p178) target = $region12
      $region11: #{tpu_custom_call.1} parent=5 // pred_region
        %s182 = ssub.s32 %s16, 1
        // Predicated region
        $region13: #{tpu_custom_call.1} parent=11 // pred_check
          %p183 = pneg %p77
        $region14: #{tpu_custom_call.1} parent=11 // pred_check_branch
          %185 = sbr.rel (%p183) target = $region16
        $region15: #{tpu_custom_call.1} parent=11 // pred_region
          %s187 = ssub.s32 256, 256
          %188 = vsyncadd [#allocation5], %s187
          %s189 = sshll.u32 [#allocation4], 4
          %s190 = int_to_ptr.vmem [resolvable:$true] %s189
          %195 = dma.hbm_to_vmem [thread:$0]  %s1, 256, %s190, [#allocation5], 128, 128, 8
        $region16: #{tpu_custom_call.1} parent=11 // pred_fallthru
          _
        // Predicated region
        $region17: #{tpu_custom_call.1} parent=11 // pred_check
          %p196 = pneg %p98
        $region18: #{tpu_custom_call.1} parent=11 // pred_check_branch
          %198 = sbr.rel (%p196) target = $region20
        $region19: #{tpu_custom_call.1} parent=11 // pred_region
          %s200 = ssub.s32 256, 256
          %201 = vsyncadd [#allocation8], %s200
          %s202 = sshll.u32 [#allocation7], 4
          %s203 = int_to_ptr.vmem [resolvable:$true] %s202
          %208 = dma.hbm_to_vmem [thread:$0]  %s2, 256, %s203, [#allocation8], 128, 128, 8
        $region20: #{tpu_custom_call.1} parent=11 // pred_fallthru
          _
        // Predicated region
        $region21: #{tpu_custom_call.1} parent=11 // pred_check
          %p209 = pneg %p119
        $region22: #{tpu_custom_call.1} parent=11 // pred_check_branch
          %211 = sbr.rel (%p209) target = $region24
        $region23: #{tpu_custom_call.1} parent=11 // pred_region
          _
        $region24: #{tpu_custom_call.1} parent=11 // pred_fallthru
          _
        // Predicated region
        $region25: #{tpu_custom_call.1} parent=11 // pred_check
          %p212 = pneg %p140
        $region26: #{tpu_custom_call.1} parent=11 // pred_check_branch
          %214 = sbr.rel (%p212) target = $region28
        $region27: #{tpu_custom_call.1} parent=11 // pred_region
          _
        $region28: #{tpu_custom_call.1} parent=11 // pred_fallthru
          _
      $region12: #{tpu_custom_call.1} parent=5 // pred_fallthru
        _
      %p215 = scmp.lt.s32.totalorder %s16, 4
      // Predicated region
      $region29: #{tpu_custom_call.1} parent=5 // pred_check
        %p216 = pneg %p215
      $region30: #{tpu_custom_call.1} parent=5 // pred_check_branch
        %218 = sbr.rel (%p216) target = $region32
      $region31: #{tpu_custom_call.1} parent=5 // pred_region
        // Predicated region
        $region33: #{tpu_custom_call.1} parent=31 // pred_check
          %p219 = pneg %p50
        $region34: #{tpu_custom_call.1} parent=31 // pred_check_branch
          %221 = sbr.rel (%p219) target = $region36
        $region35: #{tpu_custom_call.1} parent=31 // pred_region
          %p222 = scmp.lt.s32.totalorder %s23, 1
          %s223 = scalar_select %p222, %s23, 1
          %p224 = scmp.lt.s32.totalorder %s24, 1
          %s225 = scalar_select %p224, %s24, 1
          %s226 = smul.addr %s223, 2
          %s227 = sadd.s32 %s225, %s226
          %s228 = smul.addr %s227, 8
          %s229 = scalar_lea.vmem %s0, %s228
        $region36: #{tpu_custom_call.1} parent=31 // pred_fallthru
          _
      $region32: #{tpu_custom_call.1} parent=5 // pred_fallthru
        _
      %p230 = scmp.le.s32.totalorder 1, %s16
      %p231 = scmp.lt.s32.totalorder %s16, 5
      %p232 = pnand %p230, %p231
      %p233 = pneg %p232
      // Predicated region
      $region37: #{tpu_custom_call.1} parent=5 // pred_check
        _
      $region38: #{tpu_custom_call.1} parent=5 // pred_check_branch
        %235 = sbr.rel (%p232) target = $region40
      $region39: #{tpu_custom_call.1} parent=5 // pred_region
        %s236 = ssub.s32 %s16, 1
        // Predicated region
        $region41: #{tpu_custom_call.1} parent=39 // pred_check
          %p237 = pneg %p77
        $region42: #{tpu_custom_call.1} parent=39 // pred_check_branch
          %239 = sbr.rel (%p237) target = $region44
        $region43: #{tpu_custom_call.1} parent=39 // pred_region
          %240 = dma.done [#allocation5], 256
        $region44: #{tpu_custom_call.1} parent=39 // pred_fallthru
          _
        // Predicated region
        $region45: #{tpu_custom_call.1} parent=39 // pred_check
          %p241 = pneg %p98
        $region46: #{tpu_custom_call.1} parent=39 // pred_check_branch
          %243 = sbr.rel (%p241) target = $region48
        $region47: #{tpu_custom_call.1} parent=39 // pred_region
          %244 = dma.done [#allocation8], 256
        $region48: #{tpu_custom_call.1} parent=39 // pred_fallthru
          _
        %p245 = scmp.lt.s32.totalorder %s25, 1
        %s246 = scalar_select %p245, %s25, 1
        %p247 = scmp.lt.s32.totalorder %s26, 1
        %s248 = scalar_select %p247, %s26, 1
        %s249 = smul.addr %s246, 2
        %s250 = sadd.s32 %s248, %s249
        %s251 = smul.addr %s250, 8
        %s252 = scalar_lea.vmem %s0, %s251
        %p253 = pneg %p56
        %p254 = pneg %p53
        %p255 = pneg %p77
        %p256 = pneg %p74
        %p257 = pneg %p98
        %p258 = pneg %p95
        %p259 = pneg %p119
        %p260 = pneg %p116
        %p261 = pneg %p140
        %p262 = pneg %p137
        %p263 = pneg %p168
        %p264 = pneg %p165
        %s265 = sand.u32 %s155, 1
        %s266 = scalar_lea.sflag [#allocation6], %s265
        %s267 = sand.u32 %s155, 1
        %s268 = smul.addr %s267, 16
        %s269 = scalar_lea.vmem [#allocation9], %s268
        %p270 = scmp.lt.s32.totalorder %s25, 1
        %s271 = scalar_select %p270, %s25, 1
        %p272 = scmp.lt.s32.totalorder %s26, 1
        %s273 = scalar_select %p272, %s26, 1
        %s274 = smul.addr %s271, 2
        %s275 = sadd.s32 %s273, %s274
        %s276 = smul.addr %s275, 8
        %s277 = scalar_lea.vmem %s0, %s276
        %p278 = scmp.eq.s32.totalorder %s26, 0
        // Predicated region
        $region49: #{tpu_custom_call.1} parent=39 // pred_check
          %p279 = pneg %p278
        $region50: #{tpu_custom_call.1} parent=39 // pred_check_branch
          %281 = sbr.rel (%p279) target = $region52
        $region51: #{tpu_custom_call.1} parent=39 // pred_region
          %282 = vst [vmem:[#allocation2] sm:$0xff] 0.0
          %283 = vst [vmem:[#allocation3] sm:$0xff] 0.0
          %284 = vst [vmem:[#allocation3 + $0x8] sm:$0xff] 0.0
        $region52: #{tpu_custom_call.1} parent=39 // pred_fallthru
          _
        %v285 = vld [vmem:[%s277] sm:$0xff]
        %v286 = vld [vmem:[#allocation4] sm:$0xff]
        %v287 = vld [vmem:[#allocation4 + $0x8] sm:$0xff]
        %v288 = vld [vmem:[#allocation2] sm:$0xff]
        %291 = vrot.lane.b32.xlu0 %v288, 127
        %v292 = vpop.permute.xlu0 %291
        %293 = vrot.lane.b32.xlu0 %v285, 127
        %v294 = vpop.permute.xlu0 %293
        %vm295 = vcmask 1039360
        %v296 = vsel %vm295, %v292, %v294
        %297 = vrot.lane.b32.xlu0 %v285, 126
        %v298 = vpop.permute.xlu0 %297
        %299 = vst [vmem:[#allocation2] sm:$0xff] %v285
        %v300 = vld [vmem:[%s3] sm:$0xff]
        %v301 = vld [vmem:[%s3 + $0x8] sm:$0xff]
        %303 = vset.pattern.permute.xlu0 0
        %304 = vperm.xlu0 %303, %v300
        %v305 = vpop.permute.xlu0 %304
        %308 = vset.pattern.permute.xlu0 0
        %309 = vperm.xlu0 %308, %v301
        %v310 = vpop.permute.xlu0 %309
        %312 = vrot.lane.b32.xlu0 %v288, 2
        %v313 = vpop.permute.xlu0 %312
        %314 = vrot.lane.b32.xlu0 %v285, 2
        %v315 = vpop.permute.xlu0 %314
        %316 = vrot.lane.b32.xlu0 %v296, 2
        %v317 = vpop.permute.xlu0 %316
        %318 = vrot.lane.b32.xlu0 %v294, 2
        %v319 = vpop.permute.xlu0 %318
        %320 = vrot.lane.b32.xlu0 %v298, 2
        %v321 = vpop.permute.xlu0 %320
        %vm322 = vcmask 15360
        %v323 = vsel %vm322, %v313, %v315
        %v324 = vsel %vm322, %v317, %v319
        %vm328 = vcmask 195584
        %v330 = vsel %vm328, %v286, 0
        %v333 = vsel %vm328, %v287, 0
        %335 = vmatprep.subr.mxu0 0.0
        %336 = vmatpush1.msra.mxu0 0.0
        %337 = vmatprep.subr.mxu0 0.0
        %338 = vmatpush1.msra.mxu0 0.0
        %339 = vmatprep.subr.mxu0 0.0
        %340 = vmatpush1.msra.mxu0 0.0
        %341 = vmatprep.subr.mxu0 0.0
        %342 = vmatpush1.msra.mxu0 0.0
        %343 = vmatprep.subr.mxu0 0.0
        %344 = vmatpush1.msra.mxu0 0.0
        %345 = vmatprep.subr.mxu0 0.0
        %346 = vmatpush1.msra.mxu0 0.0
        %347 = vmatprep.subr.mxu0 0.0
        %348 = vmatpush1.msra.mxu0 0.0
        %349 = vmatprep.subr.mxu0 0.0
        %350 = vmatpush1.msra.mxu0 0.0
        %351 = vmatprep.subr.mxu0 0.0
        %352 = vmatpush1.msra.mxu0 0.0
        %353 = vmatprep.subr.mxu0 0.0
        %354 = vmatpush1.msra.mxu0 0.0
        %355 = vmatprep.subr.mxu0 0.0
        %356 = vmatpush1.msra.mxu0 0.0
        %357 = vmatprep.subr.mxu0 0.0
        %358 = vmatpush1.msra.mxu0 0.0
        %359 = vmatprep.subr.mxu0 0.0
        %360 = vmatpush1.msra.mxu0 0.0
        %361 = vmatprep.subr.mxu0 0.0
        %362 = vmatpush1.msra.mxu0 %v321
        %363 = vmatprep.subr.mxu0 0.0
        %364 = vmatpush1.msra.mxu0 %v324
        %365 = vmatprep.subr.mxu0 0.0
        %366 = vmatpush1.msra.mxu0 %v323
        %367 = vmatprep.subr.mxu0 0.0
        %368 = vmatpush2.msra.mxu0 0.0
        %369 = vmatprep.subr.mxu0 0.0
        %370 = vmatpush2.msra.mxu0 0.0
        %371 = vmatprep.subr.mxu0 0.0
        %372 = vmatpush2.msra.mxu0 0.0
        %373 = vmatprep.subr.mxu0 0.0
        %374 = vmatpush2.msra.mxu0 0.0
        %375 = vmatprep.subr.mxu0 0.0
        %376 = vmatpush2.msra.mxu0 0.0
        %377 = vmatprep.subr.mxu0 0.0
        %378 = vmatpush2.msra.mxu0 0.0
        %379 = vmatprep.subr.mxu0 0.0
        %380 = vmatpush2.msra.mxu0 0.0
        %381 = vmatprep.subr.mxu0 0.0
        %382 = vmatpush2.msra.mxu0 0.0
        %383 = vmatprep.subr.mxu0 0.0
        %384 = vmatpush2.msra.mxu0 0.0
        %385 = vmatprep.subr.mxu0 0.0
        %386 = vmatpush2.msra.mxu0 0.0
        %387 = vmatprep.subr.mxu0 0.0
        %388 = vmatpush2.msra.mxu0 0.0
        %389 = vmatprep.subr.mxu0 0.0
        %390 = vmatpush2.msra.mxu0 0.0
        %391 = vmatprep.subr.mxu0 0.0
        %392 = vmatpush2.msra.mxu0 0.0
        %393 = vmatprep.subr.mxu0 0.0
        %394 = vmatpush2.msra.mxu0 0.0
        %395 = vmatprep.subr.mxu0 0.0
        %396 = vmatpush2.msra.mxu0 0.0
        %397 = vmatprep.subr.mxu0 0.0
        %398 = vmatpush2.msra.mxu0 0.0
        %399 = vmatprep.mubr.f32.mxu0 0.0
        %400 = vmatmul.mubr.f32.gmra.mxu0 %v330
        %v401 = vpop.f32.mrf.mxu0
        %v402 = vadd.f32 %v305, %v401
        %v403 = vpop.f32.mrf.mxu0
        %404 = vmatprep.mubr.f32.mxu0 0.0
        %405 = vmatmul.mubr.f32.gmra.mxu0 %v333
        %v406 = vpop.f32.mrf.mxu0
        %v407 = vadd.f32 %v310, %v406
        %v408 = vpop.f32.mrf.mxu0
        %409 = vdwg.mxu0
        %v410 = vmul.f32 %v402, 0.01
        %v411 = vmul.f32 %v407, 0.01
        %v412 = vmax.f32 %v402, %v410
        %v413 = vmax.f32 %v407, %v411
        %v414 = vld [vmem:[#allocation7] sm:$0xff]
        %v415 = vld [vmem:[#allocation7 + $0x8] sm:$0xff]
        %v416 = vld [vmem:[#allocation3] sm:$0xff]
        %v417 = vld [vmem:[#allocation3 + $0x8] sm:$0xff]
        %422 = vrot.lane.b32.xlu0 %v416, 127
        %v423 = vpop.permute.xlu0 %422
        %424 = vrot.lane.b32.xlu0 %v412, 127
        %v425 = vpop.permute.xlu0 %424
        %426 = vrot.lane.b32.xlu0 %v417, 127
        %v427 = vpop.permute.xlu0 %426
        %428 = vrot.lane.b32.xlu0 %v413, 127
        %v429 = vpop.permute.xlu0 %428
        %v430 = vsel %vm295, %v423, %v425
        %v431 = vsel %vm295, %v427, %v429
        %432 = vrot.lane.b32.xlu0 %v412, 126
        %v433 = vpop.permute.xlu0 %432
        %434 = vrot.lane.b32.xlu0 %v413, 126
        %v435 = vpop.permute.xlu0 %434
        %436 = vst [vmem:[#allocation3] sm:$0xff] %v412
        %437 = vst [vmem:[#allocation3 + $0x8] sm:$0xff] %v413
        %v438 = vld [vmem:[%s4] sm:$0xff]
        %v439 = vld [vmem:[%s4 + $0x8] sm:$0xff]
        %441 = vset.pattern.permute.xlu0 0
        %442 = vperm.xlu0 %441, %v438
        %v443 = vpop.permute.xlu0 %442
        %446 = vset.pattern.permute.xlu0 0
        %447 = vperm.xlu0 %446, %v439
        %v448 = vpop.permute.xlu0 %447
        %450 = vrot.lane.b32.xlu0 %v416, 2
        %v451 = vpop.permute.xlu0 %450
        %452 = vrot.lane.b32.xlu0 %v412, 2
        %v453 = vpop.permute.xlu0 %452
        %454 = vrot.lane.b32.xlu0 %v417, 2
        %v455 = vpop.permute.xlu0 %454
        %456 = vrot.lane.b32.xlu0 %v413, 2
        %v457 = vpop.permute.xlu0 %456
        %458 = vrot.lane.b32.xlu0 %v430, 2
        %v459 = vpop.permute.xlu0 %458
        %460 = vrot.lane.b32.xlu0 %v425, 2
        %v461 = vpop.permute.xlu0 %460
        %462 = vrot.lane.b32.xlu0 %v431, 2
        %v463 = vpop.permute.xlu0 %462
        %464 = vrot.lane.b32.xlu0 %v429, 2
        %v465 = vpop.permute.xlu0 %464
        %466 = vrot.lane.b32.xlu0 %v433, 2
        %v467 = vpop.permute.xlu0 %466
        %468 = vrot.lane.b32.xlu0 %v435, 2
        %v469 = vpop.permute.xlu0 %468
        %v470 = vsel %vm322, %v451, %v453
        %v471 = vsel %vm322, %v455, %v457
        %v472 = vsel %vm322, %v459, %v461
        %v473 = vsel %vm322, %v463, %v465
        %vm480 = vcmask 392192
        %v482 = vsel %vm480, %v414, 0
        %v485 = vsel %vm480, %v415, 0
        %487 = vmatprep.subr.mxu0 0.0
        %488 = vmatpush1.msra.mxu0 0.0
        %489 = vmatprep.subr.mxu0 0.0
        %490 = vmatpush1.msra.mxu0 0.0
        %491 = vmatprep.subr.mxu0 0.0
        %492 = vmatpush1.msra.mxu0 0.0
        %493 = vmatprep.subr.mxu0 0.0
        %494 = vmatpush1.msra.mxu0 0.0
        %495 = vmatprep.subr.mxu0 0.0
        %496 = vmatpush1.msra.mxu0 0.0
        %497 = vmatprep.subr.mxu0 0.0
        %498 = vmatpush1.msra.mxu0 0.0
        %499 = vmatprep.subr.mxu0 0.0
        %500 = vmatpush1.msra.mxu0 0.0
        %501 = vmatprep.subr.mxu0 0.0
        %502 = vmatpush1.msra.mxu0 0.0
        %503 = vmatprep.subr.mxu0 0.0
        %504 = vmatpush1.msra.mxu0 0.0
        %505 = vmatprep.subr.mxu0 0.0
        %506 = vmatpush1.msra.mxu0 0.0
        %507 = vmatprep.subr.mxu0 0.0
        %508 = vmatpush1.msra.mxu0 %v469
        %509 = vmatprep.subr.mxu0 0.0
        %510 = vmatpush1.msra.mxu0 %v467
        %511 = vmatprep.subr.mxu0 0.0
        %512 = vmatpush1.msra.mxu0 %v473
        %513 = vmatprep.subr.mxu0 0.0
        %514 = vmatpush1.msra.mxu0 %v472
        %515 = vmatprep.subr.mxu0 0.0
        %516 = vmatpush1.msra.mxu0 %v471
        %517 = vmatprep.subr.mxu0 0.0
        %518 = vmatpush1.msra.mxu0 %v470
        %519 = vmatprep.subr.mxu0 0.0
        %520 = vmatpush2.msra.mxu0 0.0
        %521 = vmatprep.subr.mxu0 0.0
        %522 = vmatpush2.msra.mxu0 0.0
        %523 = vmatprep.subr.mxu0 0.0
        %524 = vmatpush2.msra.mxu0 0.0
        %525 = vmatprep.subr.mxu0 0.0
        %526 = vmatpush2.msra.mxu0 0.0
        %527 = vmatprep.subr.mxu0 0.0
        %528 = vmatpush2.msra.mxu0 0.0
        %529 = vmatprep.subr.mxu0 0.0
        %530 = vmatpush2.msra.mxu0 0.0
        %531 = vmatprep.subr.mxu0 0.0
        %532 = vmatpush2.msra.mxu0 0.0
        %533 = vmatprep.subr.mxu0 0.0
        %534 = vmatpush2.msra.mxu0 0.0
        %535 = vmatprep.subr.mxu0 0.0
        %536 = vmatpush2.msra.mxu0 0.0
        %537 = vmatprep.subr.mxu0 0.0
        %538 = vmatpush2.msra.mxu0 0.0
        %539 = vmatprep.subr.mxu0 0.0
        %540 = vmatpush2.msra.mxu0 0.0
        %541 = vmatprep.subr.mxu0 0.0
        %542 = vmatpush2.msra.mxu0 0.0
        %543 = vmatprep.subr.mxu0 0.0
        %544 = vmatpush2.msra.mxu0 0.0
        %545 = vmatprep.subr.mxu0 0.0
        %546 = vmatpush2.msra.mxu0 0.0
        %547 = vmatprep.subr.mxu0 0.0
        %548 = vmatpush2.msra.mxu0 0.0
        %549 = vmatprep.subr.mxu0 0.0
        %550 = vmatpush2.msra.mxu0 0.0
        %551 = vmatprep.mubr.f32.mxu0 0.0
        %552 = vmatmul.mubr.f32.gmra.mxu0 %v482
        %v553 = vpop.f32.mrf.mxu0
        %v554 = vadd.f32 %v443, %v553
        %v555 = vpop.f32.mrf.mxu0
        %556 = vmatprep.mubr.f32.mxu0 0.0
        %557 = vmatmul.mubr.f32.gmra.mxu0 %v485
        %v558 = vpop.f32.mrf.mxu0
        %v559 = vadd.f32 %v448, %v558
        %v560 = vpop.f32.mrf.mxu0
        %561 = vdwg.mxu0
        %v562 = vmul.f32 %v554, 0.01
        %v563 = vmul.f32 %v559, 0.01
        %v564 = vmax.f32 %v554, %v562
        %v565 = vmax.f32 %v559, %v563
        %v566 = vadd.f32 %v412, %v564
        %v567 = vadd.f32 %v413, %v565
        %568 = vst [vmem:[%s269] sm:$0xff] %v566
        %569 = vst [vmem:[%s269 + $0x8] sm:$0xff] %v567
        %s570 = sand.u32 %s155, 1
        %s571 = scalar_lea.sflag [#allocation6], %s570
        %s572 = sand.u32 %s155, 1
        %s573 = smul.addr %s572, 16
        %s574 = scalar_lea.vmem [#allocation9], %s573
        // Predicated region
        $region53: #{tpu_custom_call.1} parent=39 // pred_check
          %p575 = pneg %p165
        $region54: #{tpu_custom_call.1} parent=39 // pred_check_branch
          %577 = sbr.rel (%p575) target = $region56
        $region55: #{tpu_custom_call.1} parent=39 // pred_region
          %s579 = ssub.s32 256, 256
          %580 = vsyncadd %s571, %s579
          %s581 = smul.addr %s25, 4
          %s582 = sadd.s32 %s26, %s581
          %s583 = smul.addr %s582, 128
          %s584 = scalar_lea.hbm %s5, %s583
          %s585 = sshll.u32 %s574, 4
          %s586 = int_to_ptr.vmem [resolvable:$true] %s585
          %591 = dma.vmem_to_hbm [thread:$0]  %s586, 256, %s584, %s571, 128, 256, 8
        $region56: #{tpu_custom_call.1} parent=39 // pred_fallthru
          _
      $region40: #{tpu_custom_call.1} parent=5 // pred_fallthru
        _
      %p592 = scmp.le.s32.totalorder 2, %s16
      // Predicated region
      $region57: #{tpu_custom_call.1} parent=5 // pred_check
        %p593 = pneg %p592
      $region58: #{tpu_custom_call.1} parent=5 // pred_check_branch
        %595 = sbr.rel (%p593) target = $region60
      $region59: #{tpu_custom_call.1} parent=5 // pred_region
        %s596 = ssub.s32 %s16, 2
        // Predicated region
        $region61: #{tpu_custom_call.1} parent=59 // pred_check
          %p597 = pneg %p171
        $region62: #{tpu_custom_call.1} parent=59 // pred_check_branch
          %599 = sbr.rel (%p597) target = $region64
        $region63: #{tpu_custom_call.1} parent=59 // pred_region
          %s600 = sand.u32 %s156, 1
          %s601 = scalar_lea.sflag [#allocation6], %s600
          %s602 = sand.u32 %s156, 1
          %s603 = smul.addr %s602, 16
          %s604 = scalar_lea.vmem [#allocation9], %s603
          %605 = dma.done %s601, 256
        $region64: #{tpu_custom_call.1} parent=59 // pred_fallthru
          _
      $region60: #{tpu_custom_call.1} parent=5 // pred_fallthru
        _
    $region6: #{tpu_custom_call.1} parent=1 // loop_footer
      %s20 = sadd.s32 1, %s16
    $region7: #{tpu_custom_call.1} parent=1 // loop_footer_branch
      %15 = sbr.rel target = $region3
    $region8: #{tpu_custom_call.1} parent=1 // loop_exit
      _
    %606 = vsyncpa [#allocation5], 1
    %s607 = scalar_lea.sflag [#allocation5], 1
    %608 = vsyncpa %s607, 1
    %609 = vsyncpa [#allocation8], 1
    %610 = vsyncpa [#allocation6], 1
    %s611 = scalar_lea.sflag [#allocation6], 1
    %612 = vsyncpa %s611, 1

</llo_original>
